<compile_context>
chip_gen: v6e
topology: v6e:2x2x1
jax: 0.10.0
libtpu: 0.0.40
codegen_flags: <defaults>
</compile_context>

<pallas_src>
import jax
import jax.numpy as jnp
from jax.experimental import pallas as pl
from jax.experimental.pallas import tpu as pltpu

LANE = 128  # TPU lane width


def mlp_kernel(x_ref, w1_ref, b1_ref, w2_ref, b2_ref, wl_ref, bl_ref, out_ref):
    # Whole (tiny) problem is VMEM-resident.  Three MXU matmuls on bf16 inputs
    # with f32 accumulation; bias add / ReLU / tanh in f32 on the VPU/EUP.
    x = x_ref[...]  # (B, in) bf16

    # Hidden layer 1: Linear + ReLU  (weights pre-transposed to (in, out))
    h1 = jnp.dot(x, w1_ref[...], preferred_element_type=jnp.float32) + b1_ref[...]
    h1 = jnp.maximum(h1, 0.0)

    # Hidden layer 2: Linear + Tanh
    h2 = jnp.dot(h1.astype(jnp.bfloat16), w2_ref[...],
                 preferred_element_type=jnp.float32) + b2_ref[...]
    h2 = jnp.tanh(h2)

    # Output layer (self.logits): Linear, no activation.  wl/bl are zero-padded
    # to a lane-dense 128-wide output; the pad columns cost nothing on the MXU.
    logits = jnp.dot(h2.astype(jnp.bfloat16), wl_ref[...],
                     preferred_element_type=jnp.float32) + bl_ref[...]
    out_ref[...] = logits.astype(out_ref.dtype)


def torch_model_forward(x_img, w1, b1, w2, b2, wl, bl):
    """x_img: (B, 1, H, W) float32 NCHW image. Weights are PyTorch-style
    (out_features, in_features). Returns (B, num_classes) float32 logits."""
    B = x_img.shape[0]
    input_size = x_img.shape[1] * x_img.shape[2] * x_img.shape[3]
    x = x_img.reshape(B, input_size)            # torch's x.view(-1, input_size)

    num_classes = wl.shape[0]
    nc_pad = ((num_classes + LANE - 1) // LANE) * LANE   # lane-dense output width

    # Trace-time layout plumbing (free): transpose weights to (in, out), cast
    # matmul operands to bf16, zero-pad the logits weight/bias to nc_pad.
    x_bf = x.astype(jnp.bfloat16)
    w1_t = w1.T.astype(jnp.bfloat16)                     # (in, h1)
    w2_t = w2.T.astype(jnp.bfloat16)                     # (h1, h2)
    wl_t = jnp.zeros((wl.shape[1], nc_pad), jnp.bfloat16)
    wl_t = wl_t.at[:, :num_classes].set(wl.T.astype(jnp.bfloat16))
    b1_row = b1.reshape(1, -1).astype(jnp.float32)
    b2_row = b2.reshape(1, -1).astype(jnp.float32)
    bl_row = jnp.zeros((1, nc_pad), jnp.float32)
    bl_row = bl_row.at[:, :num_classes].set(bl.reshape(1, -1).astype(jnp.float32))

    vmem = pl.BlockSpec(memory_space=pltpu.MemorySpace.VMEM)
    out_padded = pl.pallas_call(
        mlp_kernel,
        out_shape=jax.ShapeDtypeStruct((B, nc_pad), jnp.float32),
        in_specs=[vmem] * 7,
        out_specs=vmem,
    )(x_bf, w1_t, b1_row, w2_t, b2_row, wl_t, bl_row)

    return out_padded[:, :num_classes]


def _reference_forward(x_img, w1, b1, w2, b2, wl, bl):
    # Mirrors the kernel's numerics (bf16 MXU inputs, f32 accumulation).
    x = x_img.reshape(x_img.shape[0], -1)
    h1 = jnp.dot(x.astype(jnp.bfloat16), w1.T.astype(jnp.bfloat16),
                 preferred_element_type=jnp.float32) + b1.reshape(1, -1)
    h1 = jnp.maximum(h1, 0.0)
    h2 = jnp.dot(h1.astype(jnp.bfloat16), w2.T.astype(jnp.bfloat16),
                 preferred_element_type=jnp.float32) + b2.reshape(1, -1)
    h2 = jnp.tanh(h2)
    return (jnp.dot(h2.astype(jnp.bfloat16), wl.T.astype(jnp.bfloat16),
                    preferred_element_type=jnp.float32) + bl.reshape(1, -1))


if __name__ == "__main__":
    key = jax.random.PRNGKey(0)
    kx, k1, k2, k3, kb1, kb2, kb3 = jax.random.split(key, 7)

    B, C, H, W = 8, 1, 8, 8
    input_size = C * H * W           # 64
    hidden1, hidden2 = 128, 64
    num_classes = 10

    # Deterministic parameter init (init_fn_type.Normal -> normal), PyTorch
    # weight layout (out_features, in_features); biases as row vectors.
    x_img = jax.random.normal(kx, (B, C, H, W), dtype=jnp.float32)
    w1 = jax.random.normal(k1, (hidden1, input_size), dtype=jnp.float32) * 0.1
    b1 = jax.random.normal(kb1, (1, hidden1), dtype=jnp.float32) * 0.1
    w2 = jax.random.normal(k2, (hidden2, hidden1), dtype=jnp.float32) * 0.1
    b2 = jax.random.normal(kb2, (1, hidden2), dtype=jnp.float32) * 0.1
    wl = jax.random.normal(k3, (num_classes, hidden2), dtype=jnp.float32) * 0.1
    bl = jax.random.normal(kb3, (1, num_classes), dtype=jnp.float32) * 0.1

    out = torch_model_forward(x_img, w1, b1, w2, b2, wl, bl)
    out = jax.block_until_ready(out)

    ref_bf16 = _reference_forward(x_img, w1, b1, w2, b2, wl, bl)
    assert out.shape == (B, num_classes)
    # Tight check vs a reference with the same bf16-matmul numerics.
    assert jnp.allclose(out, ref_bf16, atol=1e-2, rtol=1e-2)
    # Looser sanity check vs the pure-f32 math of the original module.
    x_flat = x_img.reshape(B, -1)
    h1_f32 = jnp.maximum(x_flat @ w1.T + b1, 0.0)
    h2_f32 = jnp.tanh(h1_f32 @ w2.T + b2)
    ref_f32 = h2_f32 @ wl.T + bl
    assert jnp.allclose(out, ref_f32, atol=1e-1, rtol=1e-1)

    print("KERNEL_OK")
</pallas_src>

<mosaic_0001>
module attributes {stable_mosaic.version = 11 : i64} {
  func.func @mlp_kernel(%arg0: memref<8x64xbf16, #tpu.memory_space<vmem>>, %arg1: memref<64x128xbf16, #tpu.memory_space<vmem>>, %arg2: memref<1x128xf32, #tpu.memory_space<vmem>>, %arg3: memref<128x64xbf16, #tpu.memory_space<vmem>>, %arg4: memref<1x64xf32, #tpu.memory_space<vmem>>, %arg5: memref<64x128xbf16, #tpu.memory_space<vmem>>, %arg6: memref<1x128xf32, #tpu.memory_space<vmem>>, %arg7: memref<8x128xf32, #tpu.memory_space<vmem>>) attributes {dimension_semantics = [], scalar_prefetch = 0 : i64, scratch_operands = 0 : i64, tpu.core_type = #tpu.core_type<tc>} {
    %c0 = arith.constant 0 : index
    %c0_0 = arith.constant 0 : index
    %0 = vector.load %arg0[%c0, %c0_0] : memref<8x64xbf16, #tpu.memory_space<vmem>>, vector<8x64xbf16>
    %c0_1 = arith.constant 0 : index
    %c0_2 = arith.constant 0 : index
    %1 = vector.load %arg1[%c0_1, %c0_2] : memref<64x128xbf16, #tpu.memory_space<vmem>>, vector<64x128xbf16>
    %cst = arith.constant dense<0.000000e+00> : vector<8x128xf32>
    %2 = tpu.matmul %0, %1, %cst {dimension_numbers = #tpu.dot_dimension_numbers<[1], [0], [0], [1], [0, 0, 1, 1], [], []>} : vector<8x64xbf16>, vector<64x128xbf16>, vector<8x128xf32> -> vector<8x128xf32>
    %c0_3 = arith.constant 0 : index
    %c0_4 = arith.constant 0 : index
    %3 = vector.load %arg2[%c0_3, %c0_4] : memref<1x128xf32, #tpu.memory_space<vmem>>, vector<1x128xf32>
    %4 = vector.broadcast %3 : vector<1x128xf32> to vector<8x128xf32>
    %5 = arith.addf %2, %4 : vector<8x128xf32>
    %cst_5 = arith.constant 0.000000e+00 : f32
    %6 = vector.broadcast %cst_5 : f32 to vector<8x128xf32>
    %7 = arith.maximumf %5, %6 : vector<8x128xf32>
    %8 = arith.truncf %7 : vector<8x128xf32> to vector<8x128xbf16>
    %c0_6 = arith.constant 0 : index
    %c0_7 = arith.constant 0 : index
    %9 = vector.load %arg3[%c0_6, %c0_7] : memref<128x64xbf16, #tpu.memory_space<vmem>>, vector<128x64xbf16>
    %cst_8 = arith.constant dense<0.000000e+00> : vector<8x64xf32>
    %10 = tpu.matmul %8, %9, %cst_8 {dimension_numbers = #tpu.dot_dimension_numbers<[1], [0], [0], [1], [0, 0, 1, 1], [], []>} : vector<8x128xbf16>, vector<128x64xbf16>, vector<8x64xf32> -> vector<8x64xf32>
    %c0_9 = arith.constant 0 : index
    %c0_10 = arith.constant 0 : index
    %11 = vector.load %arg4[%c0_9, %c0_10] : memref<1x64xf32, #tpu.memory_space<vmem>>, vector<1x64xf32>
    %12 = vector.broadcast %11 : vector<1x64xf32> to vector<8x64xf32>
    %13 = arith.addf %10, %12 : vector<8x64xf32>
    %14 = math.tanh %13 : vector<8x64xf32>
    %15 = arith.truncf %14 : vector<8x64xf32> to vector<8x64xbf16>
    %c0_11 = arith.constant 0 : index
    %c0_12 = arith.constant 0 : index
    %16 = vector.load %arg5[%c0_11, %c0_12] : memref<64x128xbf16, #tpu.memory_space<vmem>>, vector<64x128xbf16>
    %cst_13 = arith.constant dense<0.000000e+00> : vector<8x128xf32>
    %17 = tpu.matmul %15, %16, %cst_13 {dimension_numbers = #tpu.dot_dimension_numbers<[1], [0], [0], [1], [0, 0, 1, 1], [], []>} : vector<8x64xbf16>, vector<64x128xbf16>, vector<8x128xf32> -> vector<8x128xf32>
    %c0_14 = arith.constant 0 : index
    %c0_15 = arith.constant 0 : index
    %18 = vector.load %arg6[%c0_14, %c0_15] : memref<1x128xf32, #tpu.memory_space<vmem>>, vector<1x128xf32>
    %19 = vector.broadcast %18 : vector<1x128xf32> to vector<8x128xf32>
    %20 = arith.addf %17, %19 : vector<8x128xf32>
    %c0_16 = arith.constant 0 : index
    %c0_17 = arith.constant 0 : index
    %21 = vector.load %arg7[%c0_16, %c0_17] : memref<8x128xf32, #tpu.memory_space<vmem>>, vector<8x128xf32>
    tpu.vector_store %arg7[%c0_16, %c0_17], %20 {strides = array<i32>} : memref<8x128xf32, #tpu.memory_space<vmem>>, vector<8x128xf32>,
    return
  }
}

</mosaic_0001>

<llo_original>
// kernel: tpu_custom_call.1
$region0: #{tpu_custom_call.1}
  #allocation0 [shape = 'u32[]', space=smem, size = 0x4, offset = 0x4, fixed_abs, tag = 'smem constant byte address 0x4 - core index']
  #allocation1 [shape = 'u32[144,128]{1,0:T(1,128)}', space=vmem, size = 0x12000, scoped, tag = 'internal scratch']
  %s0 = inlined_call_operand.vmem [shape: bf16[8,64], index: 0, kind: input, shape index: {}]
  %s1 = inlined_call_operand.vmem [shape: bf16[64,128], index: 1, kind: input, shape index: {}]
  %s2 = inlined_call_operand.vmem [shape: f32[1,128], index: 2, kind: input, shape index: {}]
  %s3 = inlined_call_operand.vmem [shape: bf16[128,64], index: 3, kind: input, shape index: {}]
  %s4 = inlined_call_operand.vmem [shape: f32[1,64], index: 4, kind: input, shape index: {}]
  %s5 = inlined_call_operand.vmem [shape: bf16[64,128], index: 5, kind: input, shape index: {}]
  %s6 = inlined_call_operand.vmem [shape: f32[1,128], index: 6, kind: input, shape index: {}]
  %s7 = inlined_call_operand.hbm [shape: f32[8,128], index: 7, kind: output, shape index: {}]
  %s8 = sld [smem:[#allocation0]]
  $region38: #{tpu_custom_call.1} parent=0
    _
  %s10 = ssub.s32 1, %s8
  %s11 = scalar_select 0, %s10, %s8
  $region1: #{tpu_custom_call.1} parent=0
    #allocation2 [shape = 'u8[4096]{0}', space=vmem, size = 0x1000, scoped, tag = 'output window, operand 0, single buffered']
    #allocation3 [shape = 's32[1]{0}', space=sflag, size = 0x4, scoped, tag = 'scoped memory for tpu_custom_call.1']
    %12 = vsyncpa [#allocation3], 0
    // Predicated region
    $region2: #{tpu_custom_call.1} parent=1 // pred_check
      _
    $region3: #{tpu_custom_call.1} parent=1 // pred_check_branch
      %14 = sbr.rel (0) target = $region5
    $region4: #{tpu_custom_call.1} parent=1 // pred_region
      _
    $region5: #{tpu_custom_call.1} parent=1 // pred_fallthru
      _
    // Predicated region
    $region6: #{tpu_custom_call.1} parent=1 // pred_check
      _
    $region7: #{tpu_custom_call.1} parent=1 // pred_check_branch
      %16 = sbr.rel (0) target = $region9
    $region8: #{tpu_custom_call.1} parent=1 // pred_region
      _
    $region9: #{tpu_custom_call.1} parent=1 // pred_fallthru
      _
    // Predicated region
    $region10: #{tpu_custom_call.1} parent=1 // pred_check
      _
    $region11: #{tpu_custom_call.1} parent=1 // pred_check_branch
      %18 = sbr.rel (0) target = $region13
    $region12: #{tpu_custom_call.1} parent=1 // pred_region
      _
    $region13: #{tpu_custom_call.1} parent=1 // pred_fallthru
      _
    // Predicated region
    $region14: #{tpu_custom_call.1} parent=1 // pred_check
      _
    $region15: #{tpu_custom_call.1} parent=1 // pred_check_branch
      %20 = sbr.rel (0) target = $region17
    $region16: #{tpu_custom_call.1} parent=1 // pred_region
      _
    $region17: #{tpu_custom_call.1} parent=1 // pred_fallthru
      _
    // Predicated region
    $region18: #{tpu_custom_call.1} parent=1 // pred_check
      _
    $region19: #{tpu_custom_call.1} parent=1 // pred_check_branch
      %22 = sbr.rel (0) target = $region21
    $region20: #{tpu_custom_call.1} parent=1 // pred_region
      _
    $region21: #{tpu_custom_call.1} parent=1 // pred_fallthru
      _
    // Predicated region
    $region22: #{tpu_custom_call.1} parent=1 // pred_check
      _
    $region23: #{tpu_custom_call.1} parent=1 // pred_check_branch
      %24 = sbr.rel (0) target = $region25
    $region24: #{tpu_custom_call.1} parent=1 // pred_region
      _
    $region25: #{tpu_custom_call.1} parent=1 // pred_fallthru
      _
    // Predicated region
    $region26: #{tpu_custom_call.1} parent=1 // pred_check
      _
    $region27: #{tpu_custom_call.1} parent=1 // pred_check_branch
      %26 = sbr.rel (0) target = $region29
    $region28: #{tpu_custom_call.1} parent=1 // pred_region
      _
    $region29: #{tpu_custom_call.1} parent=1 // pred_fallthru
      _
    %v28 = vld [vmem:[%s0] sm:$0xf]
    %v29 = vld [vmem:[%s1] sm:$0xf]
    %v30 = vld [vmem:[%s1 + $0x4] sm:$0xf]
    %v31 = vld [vmem:[%s1 + $0x8] sm:$0xf]
    %v32 = vld [vmem:[%s1 + $0xc] sm:$0xf]
    %v33 = vld [vmem:[%s1 + $0x10] sm:$0xf]
    %v34 = vld [vmem:[%s1 + $0x14] sm:$0xf]
    %v35 = vld [vmem:[%s1 + $0x18] sm:$0xf]
    %v36 = vld [vmem:[%s1 + $0x1c] sm:$0xf]
    %v37 = vld [vmem:[%s2] sm:$0x1]
    %v39 = vlaneseq
    %v40 = vshrl.u32 %v39, 7
    %v41 = vsub.s32 0, %v40
    %v42 = vrot.slane %v37, %v41
    %v52 = vunpack.c.l.b16 %v29
    %v53 = vunpack.c.l.b16 %v30
    %v54 = vunpack.c.l.b16 %v31
    %v55 = vunpack.c.l.b16 %v32
    %v56 = vunpack.c.l.b16 %v33
    %v57 = vunpack.c.l.b16 %v34
    %v58 = vunpack.c.l.b16 %v35
    %v59 = vunpack.c.l.b16 %v36
    %v60 = vpack.c.b16 %v53, %v52
    %v61 = vpack.c.b16 %v55, %v54
    %v62 = vpack.c.b16 %v57, %v56
    %v63 = vpack.c.b16 %v59, %v58
    %vm68 = vcmask 523264
    %v70 = vsel %vm68, %v28, 0
    %72 = vmatprep.subr.bf16.mxu0 0
    %73 = vmatpush1.bf16.msra.mxu0 0
    %74 = vmatprep.subr.bf16.mxu0 0
    %75 = vmatpush1.bf16.msra.mxu0 0
    %76 = vmatprep.subr.bf16.mxu0 0
    %77 = vmatpush1.bf16.msra.mxu0 0
    %78 = vmatprep.subr.bf16.mxu0 0
    %79 = vmatpush1.bf16.msra.mxu0 0
    %80 = vmatprep.subr.bf16.mxu0 0
    %81 = vmatpush1.bf16.msra.mxu0 %v63
    %82 = vmatprep.subr.bf16.mxu0 0
    %83 = vmatpush1.bf16.msra.mxu0 %v62
    %84 = vmatprep.subr.bf16.mxu0 0
    %85 = vmatpush1.bf16.msra.mxu0 %v61
    %86 = vmatprep.subr.bf16.mxu0 0
    %87 = vmatpush1.bf16.msra.mxu0 %v60
    %88 = vmatprep.subr.bf16.mxu0 0
    %89 = vmatpush2.bf16.msra.mxu0 0
    %90 = vmatprep.subr.bf16.mxu0 0
    %91 = vmatpush2.bf16.msra.mxu0 0
    %92 = vmatprep.subr.bf16.mxu0 0
    %93 = vmatpush2.bf16.msra.mxu0 0
    %94 = vmatprep.subr.bf16.mxu0 0
    %95 = vmatpush2.bf16.msra.mxu0 0
    %96 = vmatprep.subr.bf16.mxu0 0
    %97 = vmatpush2.bf16.msra.mxu0 0
    %98 = vmatprep.subr.bf16.mxu0 0
    %99 = vmatpush2.bf16.msra.mxu0 0
    %100 = vmatprep.subr.bf16.mxu0 0
    %101 = vmatpush2.bf16.msra.mxu0 0
    %102 = vmatprep.subr.bf16.mxu0 0
    %103 = vmatpush2.bf16.msra.mxu0 0
    %104 = vmatprep.mubr.bf16.mxu0 0
    %105 = vmatmul.mubr.bf16.gmra.mxu0 %v70
    %v106 = vpop.f32.mrf.mxu0
    %v107 = vadd.f32 %v42, %v106
    %v108 = vpop.f32.mrf.mxu0
    %v109 = vpop.f32.mrf.mxu0
    %v110 = vpop.f32.mrf.mxu0
    %111 = vdwg.mxu0
    %v112 = vmax.f32 %v107, 0.0
    %v113 = vpack.c.bf16 %v112, %v112
    %v114 = vld [vmem:[%s3] sm:$0xf]
    %v115 = vld [vmem:[%s3 + $0x4] sm:$0xf]
    %v116 = vld [vmem:[%s3 + $0x8] sm:$0xf]
    %v117 = vld [vmem:[%s3 + $0xc] sm:$0xf]
    %v118 = vld [vmem:[%s3 + $0x10] sm:$0xf]
    %v119 = vld [vmem:[%s3 + $0x14] sm:$0xf]
    %v120 = vld [vmem:[%s3 + $0x18] sm:$0xf]
    %v121 = vld [vmem:[%s3 + $0x1c] sm:$0xf]
    %v122 = vld [vmem:[%s3 + $0x20] sm:$0xf]
    %v123 = vld [vmem:[%s3 + $0x24] sm:$0xf]
    %v124 = vld [vmem:[%s3 + $0x28] sm:$0xf]
    %v125 = vld [vmem:[%s3 + $0x2c] sm:$0xf]
    %v126 = vld [vmem:[%s3 + $0x30] sm:$0xf]
    %v127 = vld [vmem:[%s3 + $0x34] sm:$0xf]
    %v128 = vld [vmem:[%s3 + $0x38] sm:$0xf]
    %v129 = vld [vmem:[%s3 + $0x3c] sm:$0xf]
    %v130 = vld [vmem:[%s4] sm:$0x1]
    %v132 = vlaneseq
    %v133 = vshrl.u32 %v132, 7
    %v134 = vsub.s32 0, %v133
    %v135 = vrot.slane %v130, %v134
    %v153 = vunpack.c.l.b16 %v114
    %v154 = vunpack.c.l.b16 %v115
    %v155 = vunpack.c.l.b16 %v116
    %v156 = vunpack.c.l.b16 %v117
    %v157 = vunpack.c.l.b16 %v118
    %v158 = vunpack.c.l.b16 %v119
    %v159 = vunpack.c.l.b16 %v120
    %v160 = vunpack.c.l.b16 %v121
    %v161 = vunpack.c.l.b16 %v122
    %v162 = vunpack.c.l.b16 %v123
    %v163 = vunpack.c.l.b16 %v124
    %v164 = vunpack.c.l.b16 %v125
    %v165 = vunpack.c.l.b16 %v126
    %v166 = vunpack.c.l.b16 %v127
    %v167 = vunpack.c.l.b16 %v128
    %v168 = vunpack.c.l.b16 %v129
    %v169 = vpack.c.b16 %v154, %v153
    %v170 = vpack.c.b16 %v156, %v155
    %v171 = vpack.c.b16 %v158, %v157
    %v172 = vpack.c.b16 %v160, %v159
    %v173 = vpack.c.b16 %v162, %v161
    %v174 = vpack.c.b16 %v164, %v163
    %v175 = vpack.c.b16 %v166, %v165
    %v176 = vpack.c.b16 %v168, %v167
    %185 = vmatprep.subr.bf16.mxu0 0
    %186 = vmatpush1.bf16.msra.mxu0 %v176
    %187 = vmatprep.subr.bf16.mxu0 0
    %188 = vmatpush1.bf16.msra.mxu0 %v175
    %189 = vmatprep.subr.bf16.mxu0 0
    %190 = vmatpush1.bf16.msra.mxu0 %v174
    %191 = vmatprep.subr.bf16.mxu0 0
    %192 = vmatpush1.bf16.msra.mxu0 %v173
    %193 = vmatprep.subr.bf16.mxu0 0
    %194 = vmatpush1.bf16.msra.mxu0 %v172
    %195 = vmatprep.subr.bf16.mxu0 0
    %196 = vmatpush1.bf16.msra.mxu0 %v171
    %197 = vmatprep.subr.bf16.mxu0 0
    %198 = vmatpush1.bf16.msra.mxu0 %v170
    %199 = vmatprep.subr.bf16.mxu0 0
    %200 = vmatpush1.bf16.msra.mxu0 %v169
    %201 = vmatprep.subr.bf16.mxu0 0
    %202 = vmatpush2.bf16.msra.mxu0 0
    %203 = vmatprep.subr.bf16.mxu0 0
    %204 = vmatpush2.bf16.msra.mxu0 0
    %205 = vmatprep.subr.bf16.mxu0 0
    %206 = vmatpush2.bf16.msra.mxu0 0
    %207 = vmatprep.subr.bf16.mxu0 0
    %208 = vmatpush2.bf16.msra.mxu0 0
    %209 = vmatprep.subr.bf16.mxu0 0
    %210 = vmatpush2.bf16.msra.mxu0 0
    %211 = vmatprep.subr.bf16.mxu0 0
    %212 = vmatpush2.bf16.msra.mxu0 0
    %213 = vmatprep.subr.bf16.mxu0 0
    %214 = vmatpush2.bf16.msra.mxu0 0
    %215 = vmatprep.subr.bf16.mxu0 0
    %216 = vmatpush2.bf16.msra.mxu0 0
    %217 = vmatprep.mubr.bf16.mxu0 0
    %218 = vmatmul.mubr.bf16.gmra.mxu0 %v113
    %v219 = vpop.f32.mrf.mxu0
    %v220 = vadd.f32 %v135, %v219
    %v221 = vpop.f32.mrf.mxu0
    %v222 = vpop.f32.mrf.mxu0
    %v223 = vpop.f32.mrf.mxu0
    %224 = vdwg.mxu0
    %v225 = vtanh.pop %v220
    %v226 = vpack.c.bf16 %v225, %v225
    %v227 = vld [vmem:[%s5] sm:$0xf]
    %v228 = vld [vmem:[%s5 + $0x4] sm:$0xf]
    %v229 = vld [vmem:[%s5 + $0x8] sm:$0xf]
    %v230 = vld [vmem:[%s5 + $0xc] sm:$0xf]
    %v231 = vld [vmem:[%s5 + $0x10] sm:$0xf]
    %v232 = vld [vmem:[%s5 + $0x14] sm:$0xf]
    %v233 = vld [vmem:[%s5 + $0x18] sm:$0xf]
    %v234 = vld [vmem:[%s5 + $0x1c] sm:$0xf]
    %v235 = vld [vmem:[%s6] sm:$0x1]
    %v237 = vlaneseq
    %v238 = vshrl.u32 %v237, 7
    %v239 = vsub.s32 0, %v238
    %v240 = vrot.slane %v235, %v239
    %v250 = vunpack.c.l.b16 %v227
    %v251 = vunpack.c.l.b16 %v228
    %v252 = vunpack.c.l.b16 %v229
    %v253 = vunpack.c.l.b16 %v230
    %v254 = vunpack.c.l.b16 %v231
    %v255 = vunpack.c.l.b16 %v232
    %v256 = vunpack.c.l.b16 %v233
    %v257 = vunpack.c.l.b16 %v234
    %v258 = vpack.c.b16 %v251, %v250
    %v259 = vpack.c.b16 %v253, %v252
    %v260 = vpack.c.b16 %v255, %v254
    %v261 = vpack.c.b16 %v257, %v256
    %v267 = vsel %vm68, %v226, 0
    %269 = vmatprep.subr.bf16.mxu0 0
    %270 = vmatpush1.bf16.msra.mxu0 0
    %271 = vmatprep.subr.bf16.mxu0 0
    %272 = vmatpush1.bf16.msra.mxu0 0
    %273 = vmatprep.subr.bf16.mxu0 0
    %274 = vmatpush1.bf16.msra.mxu0 0
    %275 = vmatprep.subr.bf16.mxu0 0
    %276 = vmatpush1.bf16.msra.mxu0 0
    %277 = vmatprep.subr.bf16.mxu0 0
    %278 = vmatpush1.bf16.msra.mxu0 %v261
    %279 = vmatprep.subr.bf16.mxu0 0
    %280 = vmatpush1.bf16.msra.mxu0 %v260
    %281 = vmatprep.subr.bf16.mxu0 0
    %282 = vmatpush1.bf16.msra.mxu0 %v259
    %283 = vmatprep.subr.bf16.mxu0 0
    %284 = vmatpush1.bf16.msra.mxu0 %v258
    %285 = vmatprep.subr.bf16.mxu0 0
    %286 = vmatpush2.bf16.msra.mxu0 0
    %287 = vmatprep.subr.bf16.mxu0 0
    %288 = vmatpush2.bf16.msra.mxu0 0
    %289 = vmatprep.subr.bf16.mxu0 0
    %290 = vmatpush2.bf16.msra.mxu0 0
    %291 = vmatprep.subr.bf16.mxu0 0
    %292 = vmatpush2.bf16.msra.mxu0 0
    %293 = vmatprep.subr.bf16.mxu0 0
    %294 = vmatpush2.bf16.msra.mxu0 0
    %295 = vmatprep.subr.bf16.mxu0 0
    %296 = vmatpush2.bf16.msra.mxu0 0
    %297 = vmatprep.subr.bf16.mxu0 0
    %298 = vmatpush2.bf16.msra.mxu0 0
    %299 = vmatprep.subr.bf16.mxu0 0
    %300 = vmatpush2.bf16.msra.mxu0 0
    %301 = vmatprep.mubr.bf16.mxu0 0
    %302 = vmatmul.mubr.bf16.gmra.mxu0 %v267
    %v303 = vpop.f32.mrf.mxu0
    %v304 = vadd.f32 %v240, %v303
    %v305 = vpop.f32.mrf.mxu0
    %v306 = vpop.f32.mrf.mxu0
    %v307 = vpop.f32.mrf.mxu0
    %308 = vdwg.mxu0
    %309 = vst [vmem:[#allocation2] sm:$0xff] %v304
    // Predicated region
    $region30: #{tpu_custom_call.1} parent=1 // pred_check
      _
    $region31: #{tpu_custom_call.1} parent=1 // pred_check_branch
      %311 = sbr.rel (0) target = $region33
    $region32: #{tpu_custom_call.1} parent=1 // pred_region
      %s313 = ssub.s32 128, 128
      %314 = vsyncadd [#allocation3], %s313
      %s316 = sshll.u32 [#allocation2], 4
      %s317 = int_to_ptr.vmem [resolvable:$true] %s316
      %319 = dma.vmem_to_hbm [thread:$0]  %s317, 128, %s7, [#allocation3]
    $region33: #{tpu_custom_call.1} parent=1 // pred_fallthru
      _
    // Predicated region
    $region34: #{tpu_custom_call.1} parent=1 // pred_check
      _
    $region35: #{tpu_custom_call.1} parent=1 // pred_check_branch
      %321 = sbr.rel (0) target = $region37
    $region36: #{tpu_custom_call.1} parent=1 // pred_region
      %322 = dma.done [#allocation3], 128
    $region37: #{tpu_custom_call.1} parent=1 // pred_fallthru
      _
    %323 = vsyncpa [#allocation3], 1

</llo_original>
